<compile_context>
chip_gen: v6e
topology: v6e:2x2x1
jax: 0.10.0
libtpu: 0.0.40
codegen_flags: <defaults>
</compile_context>

<pallas_src>
import math

import jax
import jax.numpy as jnp
from jax.experimental import pallas as pl
from jax.experimental.pallas import tpu as pltpu

N_TIMES = 1000
BETA_RANGE = (1e-4, 0.02)
TEMB_DIM = 128            # sinusoidal time-embedding width (lane aligned)


# ---------------------------------------------------------------------------
# Pallas kernel: noising + epsilon-prediction MLP, one batch tile per grid step
# ---------------------------------------------------------------------------
def diffusion_fwd_kernel(x_ref, eps_ref, coef_ref, temb_ref,
                         w_in_ref, b1_ref, w2_ref, b2_ref,
                         noisy_ref, pred_ref):
    # --- scale_to_minus_one_to_one + make_noisy (elementwise, VPU, f32) ----
    x = x_ref[...] * 2.0 - 1.0                 # (TB, L)
    eps = eps_ref[...]                         # (TB, L)
    coef = coef_ref[...]                       # (TB, 2): [sqrt_ab, sqrt_1m_ab]
    sab = coef[:, 0:1]                         # (TB, 1) -> lane broadcast
    somab = coef[:, 1:2]
    noisy = x * sab + eps * somab
    noisy_ref[...] = noisy

    # --- self.model(noisy, t): fused first layer [noisy | temb] @ [w1; wt] -
    inp = jnp.concatenate([noisy, temb_ref[...]], axis=-1).astype(jnp.bfloat16)
    h = jnp.dot(inp, w_in_ref[...], preferred_element_type=jnp.float32)
    h = jnp.maximum(h + b1_ref[...], 0.0)      # bias + ReLU in f32
    pred = jnp.dot(h.astype(jnp.bfloat16), w2_ref[...],
                   preferred_element_type=jnp.float32) + b2_ref[...]
    pred_ref[...] = pred


# ---------------------------------------------------------------------------
# Glue: schedule, time embedding, parameter init, wrapper
# ---------------------------------------------------------------------------
def make_schedule(n_times=N_TIMES, beta_range=BETA_RANGE):
    beta_1, beta_T = beta_range
    betas = jnp.linspace(beta_1, beta_T, n_times, dtype=jnp.float32)
    alphas = 1.0 - betas
    alpha_bars = jnp.cumprod(alphas, axis=0)
    return {
        "sqrt_betas": jnp.sqrt(betas),
        "alphas": alphas,
        "sqrt_alphas": jnp.sqrt(alphas),
        "sqrt_alpha_bars": jnp.sqrt(alpha_bars),
        "sqrt_one_minus_alpha_bars": jnp.sqrt(1.0 - alpha_bars),
    }


def sinusoidal_embedding(t, dim):
    half = dim // 2
    freqs = jnp.exp(-math.log(10000.0) * jnp.arange(half, dtype=jnp.float32) / half)
    args = t.astype(jnp.float32)[:, None] * freqs[None, :]
    return jnp.concatenate([jnp.sin(args), jnp.cos(args)], axis=-1)  # (B, dim) f32


def init_model_params(key, seq_len, hidden, temb_dim=TEMB_DIM):
    k1, k2, k3 = jax.random.split(key, 3)
    scale = 0.02
    w1 = scale * jax.random.normal(k1, (seq_len, hidden), jnp.float32)
    wt = scale * jax.random.normal(k2, (temb_dim, hidden), jnp.float32)
    w2 = scale * jax.random.normal(k3, (hidden, seq_len), jnp.float32)
    return {
        # fused first-layer weight [w1; wt], stored bf16 for the MXU fast path
        "w_in": jnp.concatenate([w1, wt], axis=0).astype(jnp.bfloat16),
        "b1": jnp.zeros((1, hidden), jnp.float32),
        "w2": w2.astype(jnp.bfloat16),
        "b2": jnp.zeros((1, seq_len), jnp.float32),
    }


def _pick_tile_b(b):
    # big batches: 128 rows per MXU pass; tiny demo batches: minimum f32 sublane tile
    return 128 if b >= 128 else 8


def diffusion_forward(x, t, eps, params, schedule, *, tile_b=None):
    """x: (B, 1, L) float32 in [0, 1]; t: (B,) int32; eps: (B, 1, L) float32."""
    B, C, L = x.shape
    assert C == 1
    x2 = x.reshape(B, L).astype(jnp.float32)
    eps2 = eps.reshape(B, L).astype(jnp.float32)

    tb = tile_b if tile_b is not None else _pick_tile_b(B)
    nb = (B + tb - 1) // tb
    B_pad = nb * tb
    if B_pad != B:
        pad = B_pad - B
        x2p = jnp.pad(x2, ((0, pad), (0, 0)))
        eps2p = jnp.pad(eps2, ((0, pad), (0, 0)))
        t_pad = jnp.pad(t, (0, pad))
    else:
        x2p, eps2p, t_pad = x2, eps2, t

    # extract(a, t, x_shape): gather both schedule tables, packed as (B_pad, 2)
    coef = jnp.stack([schedule["sqrt_alpha_bars"][t_pad],
                      schedule["sqrt_one_minus_alpha_bars"][t_pad]], axis=-1)

    temb = sinusoidal_embedding(t_pad, TEMB_DIM)            # (B_pad, TEMB) f32

    w_in, b1, w2, b2 = params["w_in"], params["b1"], params["w2"], params["b2"]
    K, H = w_in.shape
    assert K == L + TEMB_DIM

    operands = (x2p, eps2p, coef, temb, w_in, b1, w2, b2)
    in_specs = [
        pl.BlockSpec((tb, L), lambda i: (i, 0)),            # x tile
        pl.BlockSpec((tb, L), lambda i: (i, 0)),            # eps tile
        pl.BlockSpec((tb, 2), lambda i: (i, 0)),            # packed schedule coefs
        pl.BlockSpec((tb, TEMB_DIM), lambda i: (i, 0)),     # time embedding tile
        pl.BlockSpec((K, H), lambda i: (0, 0)),             # w_in   (resident)
        pl.BlockSpec((1, H), lambda i: (0, 0)),             # b1     (resident)
        pl.BlockSpec((H, L), lambda i: (0, 0)),             # w2     (resident)
        pl.BlockSpec((1, L), lambda i: (0, 0)),             # b2     (resident)
    ]
    out_specs = [pl.BlockSpec((tb, L), lambda i: (i, 0)),
                 pl.BlockSpec((tb, L), lambda i: (i, 0))]

    noisy, pred = pl.pallas_call(
        diffusion_fwd_kernel,
        out_shape=(jax.ShapeDtypeStruct((B_pad, L), jnp.float32),
                   jax.ShapeDtypeStruct((B_pad, L), jnp.float32)),
        grid_spec=pltpu.PrefetchScalarGridSpec(
            num_scalar_prefetch=0,
            grid=(nb,),
            in_specs=in_specs,
            out_specs=out_specs,
        ),
        compiler_params=pltpu.CompilerParams(
            dimension_semantics=("parallel",),
            vmem_limit_bytes=64 * 1024 * 1024),
    )(*operands)

    noisy = noisy[:B].reshape(B, C, L)
    pred = pred[:B].reshape(B, C, L)
    return noisy, eps2.reshape(B, C, L), pred


if __name__ == "__main__":
    B, C, L = 16, 1, 256        # small (B, 1, L) sequence, matching forward's input
    HIDDEN = 128

    root = jax.random.PRNGKey(0)
    k_x, k_t, k_eps, k_params = jax.random.split(root, 4)

    # TODO(synk): torch.randint / torch.randn_like RNG is drawn host-side with
    # jax.random; the kernel consumes the pre-drawn t and epsilon.
    x = jax.random.uniform(k_x, (B, C, L), jnp.float32)             # min-max data in [0,1]
    t = jax.random.randint(k_t, (B,), 0, N_TIMES, dtype=jnp.int32)  # torch.randint(0, n_times)
    eps = jax.random.normal(k_eps, (B, C, L), jnp.float32)          # torch.randn_like

    params = init_model_params(k_params, L, HIDDEN)
    schedule = make_schedule()

    noisy, epsilon, pred_eps = diffusion_forward(x, t, eps, params, schedule, tile_b=8)
    jax.block_until_ready((noisy, epsilon, pred_eps))

    # --- sanity: noising math matches pure-JAX reference --------------------
    xr = x.reshape(B, L) * 2.0 - 1.0
    sab = schedule["sqrt_alpha_bars"][t][:, None]
    somab = schedule["sqrt_one_minus_alpha_bars"][t][:, None]
    noisy_ref = xr * sab + eps.reshape(B, L) * somab
    assert jnp.allclose(noisy.reshape(B, L), noisy_ref, atol=1e-5), "noising mismatch"

    # --- sanity: epsilon-predictor MLP matches bf16 reference ---------------
    temb_ref = sinusoidal_embedding(t, TEMB_DIM)
    inp_ref = jnp.concatenate([noisy_ref, temb_ref], axis=-1).astype(jnp.bfloat16)
    h_ref = jnp.maximum(
        jnp.dot(inp_ref, params["w_in"], preferred_element_type=jnp.float32)
        + params["b1"], 0.0)
    pred_ref = (jnp.dot(h_ref.astype(jnp.bfloat16), params["w2"],
                        preferred_element_type=jnp.float32) + params["b2"])
    assert jnp.allclose(pred_eps.reshape(B, L), pred_ref, atol=2e-2, rtol=2e-2), \
        "model mismatch"

    assert noisy.shape == (B, C, L) and epsilon.shape == (B, C, L) and pred_eps.shape == (B, C, L)
    assert jnp.array_equal(epsilon.reshape(B, L), eps.reshape(B, L))

    print("KERNEL_OK")
</pallas_src>

<mosaic_0001>
module attributes {stable_mosaic.version = 11 : i64} {
  func.func @diffusion_fwd_kernel(%arg0: i32, %arg1: memref<8x256xf32, #tpu.memory_space<vmem>>, %arg2: memref<8x256xf32, #tpu.memory_space<vmem>>, %arg3: memref<8x2xf32, #tpu.memory_space<vmem>>, %arg4: memref<8x128xf32, #tpu.memory_space<vmem>>, %arg5: memref<384x128xbf16, #tpu.memory_space<vmem>>, %arg6: memref<1x128xf32, #tpu.memory_space<vmem>>, %arg7: memref<128x256xbf16, #tpu.memory_space<vmem>>, %arg8: memref<1x256xf32, #tpu.memory_space<vmem>>, %arg9: memref<8x256xf32, #tpu.memory_space<vmem>>, %arg10: memref<8x256xf32, #tpu.memory_space<vmem>>) attributes {dimension_semantics = [#tpu.dimension_semantics<parallel>], iteration_bounds = array<i64: 2>, scalar_prefetch = 0 : i64, scratch_operands = 0 : i64, tpu.core_type = #tpu.core_type<tc>, window_params = [{transform_indices = @transform_0, window_bounds = array<i64: 8, 256>}, {transform_indices = @transform_1, window_bounds = array<i64: 8, 256>}, {transform_indices = @transform_2, window_bounds = array<i64: 8, 2>}, {transform_indices = @transform_3, window_bounds = array<i64: 8, 128>}, {pipeline_mode = #tpu.pipeline_mode<synchronous>, transform_indices = @transform_4, window_bounds = array<i64: 384, 128>}, {pipeline_mode = #tpu.pipeline_mode<synchronous>, transform_indices = @transform_5, window_bounds = array<i64: 1, 128>}, {pipeline_mode = #tpu.pipeline_mode<synchronous>, transform_indices = @transform_6, window_bounds = array<i64: 128, 256>}, {pipeline_mode = #tpu.pipeline_mode<synchronous>, transform_indices = @transform_7, window_bounds = array<i64: 1, 256>}, {transform_indices = @transform_8, window_bounds = array<i64: 8, 256>}, {transform_indices = @transform_9, window_bounds = array<i64: 8, 256>}]} {
    %c0 = arith.constant 0 : index
    %c0_0 = arith.constant 0 : index
    %0 = vector.load %arg1[%c0, %c0_0] : memref<8x256xf32, #tpu.memory_space<vmem>>, vector<8x256xf32>
    %cst = arith.constant 2.000000e+00 : f32
    %1 = vector.broadcast %cst : f32 to vector<8x256xf32>
    %2 = arith.mulf %0, %1 : vector<8x256xf32>
    %cst_1 = arith.constant 1.000000e+00 : f32
    %3 = vector.broadcast %cst_1 : f32 to vector<8x256xf32>
    %4 = arith.subf %2, %3 : vector<8x256xf32>
    %c0_2 = arith.constant 0 : index
    %c0_3 = arith.constant 0 : index
    %5 = vector.load %arg2[%c0_2, %c0_3] : memref<8x256xf32, #tpu.memory_space<vmem>>, vector<8x256xf32>
    %c0_4 = arith.constant 0 : index
    %c0_5 = arith.constant 0 : index
    %6 = vector.load %arg3[%c0_4, %c0_5] : memref<8x2xf32, #tpu.memory_space<vmem>>, vector<8x2xf32>
    %7 = vector.extract_strided_slice %6 {offsets = [0, 0], sizes = [8, 1], strides = [1, 1]} : vector<8x2xf32> to vector<8x1xf32>
    %8 = vector.extract_strided_slice %6 {offsets = [0, 1], sizes = [8, 1], strides = [1, 1]} : vector<8x2xf32> to vector<8x1xf32>
    %9 = vector.broadcast %7 : vector<8x1xf32> to vector<8x256xf32>
    %10 = arith.mulf %4, %9 : vector<8x256xf32>
    %11 = vector.broadcast %8 : vector<8x1xf32> to vector<8x256xf32>
    %12 = arith.mulf %5, %11 : vector<8x256xf32>
    %13 = arith.addf %10, %12 : vector<8x256xf32>
    %c0_6 = arith.constant 0 : index
    %c0_7 = arith.constant 0 : index
    %14 = vector.load %arg9[%c0_6, %c0_7] : memref<8x256xf32, #tpu.memory_space<vmem>>, vector<8x256xf32>
    tpu.vector_store %arg9[%c0_6, %c0_7], %13 {strides = array<i32>} : memref<8x256xf32, #tpu.memory_space<vmem>>, vector<8x256xf32>,
    %c0_8 = arith.constant 0 : index
    %c0_9 = arith.constant 0 : index
    %15 = vector.load %arg4[%c0_8, %c0_9] : memref<8x128xf32, #tpu.memory_space<vmem>>, vector<8x128xf32>
    %16 = tpu.concatenate %13, %15 in 1 : vector<8x256xf32>, vector<8x128xf32> -> vector<8x384xf32>
    %17 = arith.truncf %16 : vector<8x384xf32> to vector<8x384xbf16>
    %c0_10 = arith.constant 0 : index
    %c0_11 = arith.constant 0 : index
    %18 = vector.load %arg5[%c0_10, %c0_11] : memref<384x128xbf16, #tpu.memory_space<vmem>>, vector<384x128xbf16>
    %cst_12 = arith.constant dense<0.000000e+00> : vector<8x128xf32>
    %19 = tpu.matmul %17, %18, %cst_12 {dimension_numbers = #tpu.dot_dimension_numbers<[1], [0], [0], [1], [0, 0, 1, 1], [], []>} : vector<8x384xbf16>, vector<384x128xbf16>, vector<8x128xf32> -> vector<8x128xf32>
    %c0_13 = arith.constant 0 : index
    %c0_14 = arith.constant 0 : index
    %20 = vector.load %arg6[%c0_13, %c0_14] : memref<1x128xf32, #tpu.memory_space<vmem>>, vector<1x128xf32>
    %21 = vector.broadcast %20 : vector<1x128xf32> to vector<8x128xf32>
    %22 = arith.addf %19, %21 : vector<8x128xf32>
    %cst_15 = arith.constant 0.000000e+00 : f32
    %23 = vector.broadcast %cst_15 : f32 to vector<8x128xf32>
    %24 = arith.maximumf %22, %23 : vector<8x128xf32>
    %25 = arith.truncf %24 : vector<8x128xf32> to vector<8x128xbf16>
    %c0_16 = arith.constant 0 : index
    %c0_17 = arith.constant 0 : index
    %26 = vector.load %arg7[%c0_16, %c0_17] : memref<128x256xbf16, #tpu.memory_space<vmem>>, vector<128x256xbf16>
    %cst_18 = arith.constant dense<0.000000e+00> : vector<8x256xf32>
    %27 = tpu.matmul %25, %26, %cst_18 {dimension_numbers = #tpu.dot_dimension_numbers<[1], [0], [0], [1], [0, 0, 1, 1], [], []>} : vector<8x128xbf16>, vector<128x256xbf16>, vector<8x256xf32> -> vector<8x256xf32>
    %c0_19 = arith.constant 0 : index
    %c0_20 = arith.constant 0 : index
    %28 = vector.load %arg8[%c0_19, %c0_20] : memref<1x256xf32, #tpu.memory_space<vmem>>, vector<1x256xf32>
    %29 = vector.broadcast %28 : vector<1x256xf32> to vector<8x256xf32>
    %30 = arith.addf %27, %29 : vector<8x256xf32>
    %c0_21 = arith.constant 0 : index
    %c0_22 = arith.constant 0 : index
    %31 = vector.load %arg10[%c0_21, %c0_22] : memref<8x256xf32, #tpu.memory_space<vmem>>, vector<8x256xf32>
    tpu.vector_store %arg10[%c0_21, %c0_22], %30 {strides = array<i32>} : memref<8x256xf32, #tpu.memory_space<vmem>>, vector<8x256xf32>,
    return
  }
  func.func @transform_0(%arg0: i32) -> (i32, i32) {
    %c0_i32 = arith.constant 0 : i32
    %c0_i32_0 = arith.constant 0 : i32
    return %arg0, %c0_i32 : i32, i32
  }
  func.func @transform_1(%arg0: i32) -> (i32, i32) {
    %c0_i32 = arith.constant 0 : i32
    %c0_i32_0 = arith.constant 0 : i32
    return %arg0, %c0_i32 : i32, i32
  }
  func.func @transform_2(%arg0: i32) -> (i32, i32) {
    %c0_i32 = arith.constant 0 : i32
    %c0_i32_0 = arith.constant 0 : i32
    return %arg0, %c0_i32 : i32, i32
  }
  func.func @transform_3(%arg0: i32) -> (i32, i32) {
    %c0_i32 = arith.constant 0 : i32
    %c0_i32_0 = arith.constant 0 : i32
    return %arg0, %c0_i32 : i32, i32
  }
  func.func @transform_4(%arg0: i32) -> (i32, i32) {
    %c0_i32 = arith.constant 0 : i32
    %c0_i32_0 = arith.constant 0 : i32
    %c0_i32_1 = arith.constant 0 : i32
    return %c0_i32, %c0_i32_0 : i32, i32
  }
  func.func @transform_5(%arg0: i32) -> (i32, i32) {
    %c0_i32 = arith.constant 0 : i32
    %c0_i32_0 = arith.constant 0 : i32
    %c0_i32_1 = arith.constant 0 : i32
    return %c0_i32, %c0_i32_0 : i32, i32
  }
  func.func @transform_6(%arg0: i32) -> (i32, i32) {
    %c0_i32 = arith.constant 0 : i32
    %c0_i32_0 = arith.constant 0 : i32
    %c0_i32_1 = arith.constant 0 : i32
    return %c0_i32, %c0_i32_0 : i32, i32
  }
  func.func @transform_7(%arg0: i32) -> (i32, i32) {
    %c0_i32 = arith.constant 0 : i32
    %c0_i32_0 = arith.constant 0 : i32
    %c0_i32_1 = arith.constant 0 : i32
    return %c0_i32, %c0_i32_0 : i32, i32
  }
  func.func @transform_8(%arg0: i32) -> (i32, i32) {
    %c0_i32 = arith.constant 0 : i32
    %c0_i32_0 = arith.constant 0 : i32
    return %arg0, %c0_i32 : i32, i32
  }
  func.func @transform_9(%arg0: i32) -> (i32, i32) {
    %c0_i32 = arith.constant 0 : i32
    %c0_i32_0 = arith.constant 0 : i32
    return %arg0, %c0_i32 : i32, i32
  }
}

</mosaic_0001>

<llo_original>
// kernel: tpu_custom_call.1
$region0: #{tpu_custom_call.1}
  #allocation0 [shape = 'u32[]', space=smem, size = 0x4, offset = 0x4, fixed_abs, tag = 'smem constant byte address 0x4 - core index']
  #allocation1 [shape = 'u32[144,128]{1,0:T(1,128)}', space=vmem, size = 0x12000, scoped, tag = 'internal scratch']
  %s0 = inlined_call_operand.hbm [shape: f32[16,256], index: 0, kind: input, shape index: {}]
  %s1 = inlined_call_operand.hbm [shape: f32[16,256], index: 1, kind: input, shape index: {}]
  %s2 = inlined_call_operand.vmem [shape: f32[16,2], index: 2, kind: input, shape index: {}]
  %s3 = inlined_call_operand.vmem [shape: f32[16,128], index: 3, kind: input, shape index: {}]
  %s4 = inlined_call_operand.hbm [shape: bf16[384,128], index: 4, kind: input, shape index: {}]
  %s5 = inlined_call_operand.vmem [shape: f32[1,128], index: 5, kind: input, shape index: {}]
  %s6 = inlined_call_operand.hbm [shape: bf16[128,256], index: 6, kind: input, shape index: {}]
  %s7 = inlined_call_operand.vmem [shape: f32[1,256], index: 7, kind: input, shape index: {}]
  %s8 = inlined_call_operand.hbm [shape: f32[16,256], index: 8, kind: output, shape index: {0}]
  %s9 = inlined_call_operand.hbm [shape: f32[16,256], index: 9, kind: output, shape index: {1}]
  %10 = xla_tuple %s8, %s9
  %s11 = sld [smem:[#allocation0]]
  $region89: #{tpu_custom_call.1} parent=0
    _
  %s13 = ssub.s32 1, %s11
  %s14 = scalar_select 0, %s13, %s11
  $region1: #{tpu_custom_call.1} parent=0
    #allocation2 [shape = 'u8[16384]{0}', space=vmem, size = 0x4000, scoped, tag = 'input window, operand 0']
    #allocation3 [shape = 's32[2]{0}', space=sflag, size = 0x8, scoped, tag = 'scoped memory for tpu_custom_call.1']
    #allocation4 [shape = 's32[2]{0}', space=sflag, size = 0x8, scoped, tag = 'scoped memory for tpu_custom_call.1']
    #allocation5 [shape = 'u8[16384]{0}', space=vmem, size = 0x4000, scoped, tag = 'input window, operand 1']
    #allocation6 [shape = 's32[2]{0}', space=sflag, size = 0x8, scoped, tag = 'scoped memory for tpu_custom_call.1']
    #allocation7 [shape = 'u8[98304]{0}', space=vmem, size = 0x18000, scoped, tag = 'input window, operand 4, single buffered']
    #allocation8 [shape = 'u8[65536]{0}', space=vmem, size = 0x10000, scoped, tag = 'input window, operand 6, single buffered']
    #allocation9 [shape = 's32[1]{0}', space=sflag, size = 0x4, scoped, tag = 'scoped memory for tpu_custom_call.1']
    #allocation10 [shape = 'u8[16384]{0}', space=vmem, size = 0x4000, scoped, tag = 'output window, operand 0']
    #allocation11 [shape = 'u8[16384]{0}', space=vmem, size = 0x4000, scoped, tag = 'output window, operand 1']
    #allocation12 [shape = 's32[2]{0}', space=sflag, size = 0x8, scoped, tag = 'scoped memory for tpu_custom_call.1']
    %15 = vsyncpa [#allocation3], 0
    %s16 = scalar_lea.sflag [#allocation3], 1
    %17 = vsyncpa %s16, 0
    %18 = vsyncpa [#allocation6], 0
    %s19 = scalar_lea.sflag [#allocation6], 1
    %20 = vsyncpa %s19, 0
    %21 = vsyncpa [#allocation9], 0
    %22 = vsyncpa [#allocation4], 0
    %s23 = scalar_lea.sflag [#allocation4], 1
    %24 = vsyncpa %s23, 0
    %25 = vsyncpa [#allocation12], 0
    %s26 = scalar_lea.sflag [#allocation12], 1
    %27 = vsyncpa %s26, 0
    loop: start=0, step=1, limit=4
    $region2: #{tpu_custom_call.1} parent=1 // loop_pre_header
      _
    $region3: #{tpu_custom_call.1} parent=1 // loop_header
      %s29 = sphi 0, %s33
      %p30 = scmp.ge.s32.totalorder %s29, 4
      %s39 = sphi 0, %s41
      %s42 = sphi 0, %s39
      %s43 = sphi 0, %s42
      %s59 = sphi 0, %s43
      %s65 = sphi 0, %s67
      %s68 = sphi 0, %s65
      %s69 = sphi 0, %s68
      %s85 = sphi 0, %s69
      %s91 = sphi 0, %s93
      %s94 = sphi 0, %s91
      %s95 = sphi 0, %s94
      %s111 = sphi 0, %s95
      %s117 = sphi 0, %s119
      %s120 = sphi 0, %s117
      %s121 = sphi 0, %s120
      %s137 = sphi 0, %s121
      %s141 = sphi 0, %s141
      %s143 = sphi 0, %s141
      %s144 = sphi 0, %s143
      %s158 = sphi 0, %s144
      %s162 = sphi 0, %s162
      %s164 = sphi 0, %s162
      %s165 = sphi 0, %s164
      %s179 = sphi 0, %s165
      %s183 = sphi 0, %s183
      %s185 = sphi 0, %s183
      %s186 = sphi 0, %s185
      %s200 = sphi 0, %s186
      %s204 = sphi 0, %s204
      %s206 = sphi 0, %s204
      %s207 = sphi 0, %s206
      %s221 = sphi 0, %s207
      %s227 = sphi 0, %s229
      %s230 = sphi 0, %s227
      %s231 = sphi 0, %s230
      %s247 = sphi 0, %s231
      %s253 = sphi 0, %s255
      %s256 = sphi 0, %s253
      %s257 = sphi 0, %s256
      %s273 = sphi 0, %s257
    $region4: #{tpu_custom_call.1} parent=1 // loop_header_branch
      %32 = sbr.rel (%p30) target = $region8
    $region5: #{tpu_custom_call.1} parent=1 // loop_body
      %s34 = ssub.s32 %s29, 1
      %s35 = ssub.s32 %s29, 2
      %s36 = sadd.s32 %s29, 1
      %s37 = ssub.s32 %s29, %s36
      %p38 = scmp.eq.s32.totalorder %s37, 0
      %s40 = sadd.s32 %s39, 1
      %s41 = scalar_select %p38, %s39, %s40
      %p44 = pneg %p38
      %p45 = scmp.eq.s32.totalorder %s29, 1
      %p46 = por %p44, %p45
      %p47 = scmp.ne.s32.totalorder %s39, %s42
      %p48 = scmp.eq.s32.totalorder %s29, 0
      %p49 = por %p47, %p48
      %p50 = scmp.ne.s32.totalorder %s39, %s42
      %p51 = scmp.eq.s32.totalorder %s34, 1
      %p52 = por %p50, %p51
      %p53 = scmp.ne.s32.totalorder %s42, %s43
      %p54 = scmp.eq.s32.totalorder %s34, 0
      %p55 = por %p53, %p54
      %p56 = scmp.ne.s32.totalorder %s42, %s43
      %p57 = scmp.eq.s32.totalorder %s35, 1
      %p58 = por %p56, %p57
      %p60 = scmp.ne.s32.totalorder %s43, %s59
      %p61 = scmp.eq.s32.totalorder %s35, 0
      %p62 = por %p60, %p61
      %s63 = ssub.s32 %s29, %s36
      %p64 = scmp.eq.s32.totalorder %s63, 0
      %s66 = sadd.s32 %s65, 1
      %s67 = scalar_select %p64, %s65, %s66
      %p70 = pneg %p64
      %p71 = scmp.eq.s32.totalorder %s29, 1
      %p72 = por %p70, %p71
      %p73 = scmp.ne.s32.totalorder %s65, %s68
      %p74 = scmp.eq.s32.totalorder %s29, 0
      %p75 = por %p73, %p74
      %p76 = scmp.ne.s32.totalorder %s65, %s68
      %p77 = scmp.eq.s32.totalorder %s34, 1
      %p78 = por %p76, %p77
      %p79 = scmp.ne.s32.totalorder %s68, %s69
      %p80 = scmp.eq.s32.totalorder %s34, 0
      %p81 = por %p79, %p80
      %p82 = scmp.ne.s32.totalorder %s68, %s69
      %p83 = scmp.eq.s32.totalorder %s35, 1
      %p84 = por %p82, %p83
      %p86 = scmp.ne.s32.totalorder %s69, %s85
      %p87 = scmp.eq.s32.totalorder %s35, 0
      %p88 = por %p86, %p87
      %s89 = ssub.s32 %s29, %s36
      %p90 = scmp.eq.s32.totalorder %s89, 0
      %s92 = sadd.s32 %s91, 1
      %s93 = scalar_select %p90, %s91, %s92
      %p96 = pneg %p90
      %p97 = scmp.eq.s32.totalorder %s29, 1
      %p98 = por %p96, %p97
      %p99 = scmp.ne.s32.totalorder %s91, %s94
      %p100 = scmp.eq.s32.totalorder %s29, 0
      %p101 = por %p99, %p100
      %p102 = scmp.ne.s32.totalorder %s91, %s94
      %p103 = scmp.eq.s32.totalorder %s34, 1
      %p104 = por %p102, %p103
      %p105 = scmp.ne.s32.totalorder %s94, %s95
      %p106 = scmp.eq.s32.totalorder %s34, 0
      %p107 = por %p105, %p106
      %p108 = scmp.ne.s32.totalorder %s94, %s95
      %p109 = scmp.eq.s32.totalorder %s35, 1
      %p110 = por %p108, %p109
      %p112 = scmp.ne.s32.totalorder %s95, %s111
      %p113 = scmp.eq.s32.totalorder %s35, 0
      %p114 = por %p112, %p113
      %s115 = ssub.s32 %s29, %s36
      %p116 = scmp.eq.s32.totalorder %s115, 0
      %s118 = sadd.s32 %s117, 1
      %s119 = scalar_select %p116, %s117, %s118
      %p122 = pneg %p116
      %p123 = scmp.eq.s32.totalorder %s29, 1
      %p124 = por %p122, %p123
      %p125 = scmp.ne.s32.totalorder %s117, %s120
      %p126 = scmp.eq.s32.totalorder %s29, 0
      %p127 = por %p125, %p126
      %p128 = scmp.ne.s32.totalorder %s117, %s120
      %p129 = scmp.eq.s32.totalorder %s34, 1
      %p130 = por %p128, %p129
      %p131 = scmp.ne.s32.totalorder %s120, %s121
      %p132 = scmp.eq.s32.totalorder %s34, 0
      %p133 = por %p131, %p132
      %p134 = scmp.ne.s32.totalorder %s120, %s121
      %p135 = scmp.eq.s32.totalorder %s35, 1
      %p136 = por %p134, %p135
      %p138 = scmp.ne.s32.totalorder %s121, %s137
      %p139 = scmp.eq.s32.totalorder %s35, 0
      %p140 = por %p138, %p139
      %s142 = sadd.s32 %s141, 1
      %p145 = scmp.eq.s32.totalorder %s29, 1
      %p146 = scmp.ne.s32.totalorder %s141, %s143
      %p147 = scmp.eq.s32.totalorder %s29, 0
      %p148 = por %p146, %p147
      %p149 = scmp.ne.s32.totalorder %s141, %s143
      %p150 = scmp.eq.s32.totalorder %s34, 1
      %p151 = por %p149, %p150
      %p152 = scmp.ne.s32.totalorder %s143, %s144
      %p153 = scmp.eq.s32.totalorder %s34, 0
      %p154 = por %p152, %p153
      %p155 = scmp.ne.s32.totalorder %s143, %s144
      %p156 = scmp.eq.s32.totalorder %s35, 1
      %p157 = por %p155, %p156
      %p159 = scmp.ne.s32.totalorder %s144, %s158
      %p160 = scmp.eq.s32.totalorder %s35, 0
      %p161 = por %p159, %p160
      %s163 = sadd.s32 %s162, 1
      %p166 = scmp.eq.s32.totalorder %s29, 1
      %p167 = scmp.ne.s32.totalorder %s162, %s164
      %p168 = scmp.eq.s32.totalorder %s29, 0
      %p169 = por %p167, %p168
      %p170 = scmp.ne.s32.totalorder %s162, %s164
      %p171 = scmp.eq.s32.totalorder %s34, 1
      %p172 = por %p170, %p171
      %p173 = scmp.ne.s32.totalorder %s164, %s165
      %p174 = scmp.eq.s32.totalorder %s34, 0
      %p175 = por %p173, %p174
      %p176 = scmp.ne.s32.totalorder %s164, %s165
      %p177 = scmp.eq.s32.totalorder %s35, 1
      %p178 = por %p176, %p177
      %p180 = scmp.ne.s32.totalorder %s165, %s179
      %p181 = scmp.eq.s32.totalorder %s35, 0
      %p182 = por %p180, %p181
      %s184 = sadd.s32 %s183, 1
      %p187 = scmp.eq.s32.totalorder %s29, 1
      %p188 = scmp.ne.s32.totalorder %s183, %s185
      %p189 = scmp.eq.s32.totalorder %s29, 0
      %p190 = por %p188, %p189
      %p191 = scmp.ne.s32.totalorder %s183, %s185
      %p192 = scmp.eq.s32.totalorder %s34, 1
      %p193 = por %p191, %p192
      %p194 = scmp.ne.s32.totalorder %s185, %s186
      %p195 = scmp.eq.s32.totalorder %s34, 0
      %p196 = por %p194, %p195
      %p197 = scmp.ne.s32.totalorder %s185, %s186
      %p198 = scmp.eq.s32.totalorder %s35, 1
      %p199 = por %p197, %p198
      %p201 = scmp.ne.s32.totalorder %s186, %s200
      %p202 = scmp.eq.s32.totalorder %s35, 0
      %p203 = por %p201, %p202
      %s205 = sadd.s32 %s204, 1
      %p208 = scmp.eq.s32.totalorder %s29, 1
      %p209 = scmp.ne.s32.totalorder %s204, %s206
      %p210 = scmp.eq.s32.totalorder %s29, 0
      %p211 = por %p209, %p210
      %p212 = scmp.ne.s32.totalorder %s204, %s206
      %p213 = scmp.eq.s32.totalorder %s34, 1
      %p214 = por %p212, %p213
      %p215 = scmp.ne.s32.totalorder %s206, %s207
      %p216 = scmp.eq.s32.totalorder %s34, 0
      %p217 = por %p215, %p216
      %p218 = scmp.ne.s32.totalorder %s206, %s207
      %p219 = scmp.eq.s32.totalorder %s35, 1
      %p220 = por %p218, %p219
      %p222 = scmp.ne.s32.totalorder %s207, %s221
      %p223 = scmp.eq.s32.totalorder %s35, 0
      %p224 = por %p222, %p223
      %s225 = ssub.s32 %s29, %s36
      %p226 = scmp.eq.s32.totalorder %s225, 0
      %s228 = sadd.s32 %s227, 1
      %s229 = scalar_select %p226, %s227, %s228
      %p232 = pneg %p226
      %p233 = scmp.eq.s32.totalorder %s29, 1
      %p234 = por %p232, %p233
      %p235 = scmp.ne.s32.totalorder %s227, %s230
      %p236 = scmp.eq.s32.totalorder %s29, 0
      %p237 = por %p235, %p236
      %p238 = scmp.ne.s32.totalorder %s227, %s230
      %p239 = scmp.eq.s32.totalorder %s34, 1
      %p240 = por %p238, %p239
      %p241 = scmp.ne.s32.totalorder %s230, %s231
      %p242 = scmp.eq.s32.totalorder %s34, 0
      %p243 = por %p241, %p242
      %p244 = scmp.ne.s32.totalorder %s230, %s231
      %p245 = scmp.eq.s32.totalorder %s35, 1
      %p246 = por %p244, %p245
      %p248 = scmp.ne.s32.totalorder %s231, %s247
      %p249 = scmp.eq.s32.totalorder %s35, 0
      %p250 = por %p248, %p249
      %s251 = ssub.s32 %s29, %s36
      %p252 = scmp.eq.s32.totalorder %s251, 0
      %s254 = sadd.s32 %s253, 1
      %s255 = scalar_select %p252, %s253, %s254
      %p258 = pneg %p252
      %p259 = scmp.eq.s32.totalorder %s29, 1
      %p260 = por %p258, %p259
      %p261 = scmp.ne.s32.totalorder %s253, %s256
      %p262 = scmp.eq.s32.totalorder %s29, 0
      %p263 = por %p261, %p262
      %p264 = scmp.ne.s32.totalorder %s253, %s256
      %p265 = scmp.eq.s32.totalorder %s34, 1
      %p266 = por %p264, %p265
      %p267 = scmp.ne.s32.totalorder %s256, %s257
      %p268 = scmp.eq.s32.totalorder %s34, 0
      %p269 = por %p267, %p268
      %p270 = scmp.ne.s32.totalorder %s256, %s257
      %p271 = scmp.eq.s32.totalorder %s35, 1
      %p272 = por %p270, %p271
      %p274 = scmp.ne.s32.totalorder %s257, %s273
      %p275 = scmp.eq.s32.totalorder %s35, 0
      %p276 = por %p274, %p275
      %p277 = scmp.le.s32.totalorder 1, %s29
      %p278 = scmp.lt.s32.totalorder %s29, 3
      %p279 = pnand %p277, %p278
      %p280 = pneg %p279
      // Predicated region
      $region9: #{tpu_custom_call.1} parent=5 // pred_check
        _
      $region10: #{tpu_custom_call.1} parent=5 // pred_check_branch
        %282 = sbr.rel (%p279) target = $region12
      $region11: #{tpu_custom_call.1} parent=5 // pred_region
        %s283 = ssub.s32 %s29, 1
        // Predicated region
        $region13: #{tpu_custom_call.1} parent=11 // pred_check
          %p284 = pneg %p154
        $region14: #{tpu_custom_call.1} parent=11 // pred_check_branch
          %286 = sbr.rel (%p284) target = $region16
        $region15: #{tpu_custom_call.1} parent=11 // pred_region
          %s288 = ssub.s32 3072, 3072
          %289 = vsyncadd [#allocation6], %s288
          %s290 = sshll.u32 [#allocation7], 4
          %s291 = int_to_ptr.vmem [resolvable:$true] %s290
          %296 = dma.hbm_to_vmem [thread:$0]  %s4, 3072, %s291, [#allocation6], 64, 64, 4
        $region16: #{tpu_custom_call.1} parent=11 // pred_fallthru
          _
        // Predicated region
        $region17: #{tpu_custom_call.1} parent=11 // pred_check
          %p297 = pneg %p175
        $region18: #{tpu_custom_call.1} parent=11 // pred_check_branch
          %299 = sbr.rel (%p297) target = $region20
        $region19: #{tpu_custom_call.1} parent=11 // pred_region
          _
        $region20: #{tpu_custom_call.1} parent=11 // pred_fallthru
          _
        // Predicated region
        $region21: #{tpu_custom_call.1} parent=11 // pred_check
          %p300 = pneg %p196
        $region22: #{tpu_custom_call.1} parent=11 // pred_check_branch
          %302 = sbr.rel (%p300) target = $region24
        $region23: #{tpu_custom_call.1} parent=11 // pred_region
          %s304 = ssub.s32 2048, 2048
          %305 = vsyncadd [#allocation9], %s304
          %s306 = sshll.u32 [#allocation8], 4
          %s307 = int_to_ptr.vmem [resolvable:$true] %s306
          %312 = dma.hbm_to_vmem [thread:$0]  %s6, 2048, %s307, [#allocation9], 128, 128, 8
        $region24: #{tpu_custom_call.1} parent=11 // pred_fallthru
          _
        // Predicated region
        $region25: #{tpu_custom_call.1} parent=11 // pred_check
          %p313 = pneg %p217
        $region26: #{tpu_custom_call.1} parent=11 // pred_check_branch
          %315 = sbr.rel (%p313) target = $region28
        $region27: #{tpu_custom_call.1} parent=11 // pred_region
          _
        $region28: #{tpu_custom_call.1} parent=11 // pred_fallthru
          _
      $region12: #{tpu_custom_call.1} parent=5 // pred_fallthru
        _
      %p316 = scmp.lt.s32.totalorder %s29, 2
      // Predicated region
      $region29: #{tpu_custom_call.1} parent=5 // pred_check
        %p317 = pneg %p316
      $region30: #{tpu_custom_call.1} parent=5 // pred_check_branch
        %319 = sbr.rel (%p317) target = $region32
      $region31: #{tpu_custom_call.1} parent=5 // pred_region
        // Predicated region
        $region33: #{tpu_custom_call.1} parent=31 // pred_check
          %p320 = pneg %p49
        $region34: #{tpu_custom_call.1} parent=31 // pred_check_branch
          %322 = sbr.rel (%p320) target = $region36
        $region35: #{tpu_custom_call.1} parent=31 // pred_region
          %s323 = sand.u32 %s39, 1
          %s324 = scalar_lea.sflag [#allocation3], %s323
          %s325 = sand.u32 %s39, 1
          %s326 = smul.addr %s325, 16
          %s327 = scalar_lea.vmem [#allocation2], %s326
          %s329 = ssub.s32 256, 256
          %330 = vsyncadd %s324, %s329
          %s331 = smul.addr %s29, 2
          %s332 = smul.addr %s331, 128
          %s333 = scalar_lea.hbm %s0, %s332
          %s335 = sshll.u32 %s327, 4
          %s336 = int_to_ptr.vmem [resolvable:$true] %s335
          %338 = dma.hbm_to_vmem [thread:$0]  %s333, 256, %s336, %s324
        $region36: #{tpu_custom_call.1} parent=31 // pred_fallthru
          _
        // Predicated region
        $region37: #{tpu_custom_call.1} parent=31 // pred_check
          %p339 = pneg %p75
        $region38: #{tpu_custom_call.1} parent=31 // pred_check_branch
          %341 = sbr.rel (%p339) target = $region40
        $region39: #{tpu_custom_call.1} parent=31 // pred_region
          %s342 = sand.u32 %s29, 1
          %s343 = scalar_lea.sflag [#allocation6], %s342
          %s344 = sand.u32 %s65, 1
          %s345 = smul.addr %s344, 16
          %s346 = scalar_lea.vmem [#allocation5], %s345
          %s348 = ssub.s32 256, 256
          %349 = vsyncadd %s343, %s348
          %s350 = smul.addr %s29, 2
          %s351 = smul.addr %s350, 128
          %s352 = scalar_lea.hbm %s1, %s351
          %s354 = sshll.u32 %s346, 4
          %s355 = int_to_ptr.vmem [resolvable:$true] %s354
          %357 = dma.hbm_to_vmem [thread:$0]  %s352, 256, %s355, %s343
        $region40: #{tpu_custom_call.1} parent=31 // pred_fallthru
          _
        // Predicated region
        $region41: #{tpu_custom_call.1} parent=31 // pred_check
          %p358 = pneg %p101
        $region42: #{tpu_custom_call.1} parent=31 // pred_check_branch
          %360 = sbr.rel (%p358) target = $region44
        $region43: #{tpu_custom_call.1} parent=31 // pred_region
          %p361 = scmp.lt.s32.totalorder %s29, 1
          %s362 = scalar_select %p361, %s29, 1
          %s363 = smul.addr %s362, 8
          %s364 = scalar_lea.vmem %s2, %s363
        $region44: #{tpu_custom_call.1} parent=31 // pred_fallthru
          _
        // Predicated region
        $region45: #{tpu_custom_call.1} parent=31 // pred_check
          %p365 = pneg %p127
        $region46: #{tpu_custom_call.1} parent=31 // pred_check_branch
          %367 = sbr.rel (%p365) target = $region48
        $region47: #{tpu_custom_call.1} parent=31 // pred_region
          %p368 = scmp.lt.s32.totalorder %s29, 1
          %s369 = scalar_select %p368, %s29, 1
          %s370 = smul.addr %s369, 8
          %s371 = scalar_lea.vmem %s3, %s370
        $region48: #{tpu_custom_call.1} parent=31 // pred_fallthru
          _
      $region32: #{tpu_custom_call.1} parent=5 // pred_fallthru
        _
      %p372 = scmp.le.s32.totalorder 1, %s29
      %p373 = scmp.lt.s32.totalorder %s29, 3
      %p374 = pnand %p372, %p373
      %p375 = pneg %p374
      // Predicated region
      $region49: #{tpu_custom_call.1} parent=5 // pred_check
        _
      $region50: #{tpu_custom_call.1} parent=5 // pred_check_branch
        %377 = sbr.rel (%p374) target = $region52
      $region51: #{tpu_custom_call.1} parent=5 // pred_region
        %s378 = ssub.s32 %s29, 1
        %s379 = sand.u32 %s42, 1
        %s380 = scalar_lea.sflag [#allocation3], %s379
        %s381 = sand.u32 %s42, 1
        %s382 = smul.addr %s381, 16
        %s383 = scalar_lea.vmem [#allocation2], %s382
        // Predicated region
        $region53: #{tpu_custom_call.1} parent=51 // pred_check
          %p384 = pneg %p55
        $region54: #{tpu_custom_call.1} parent=51 // pred_check_branch
          %386 = sbr.rel (%p384) target = $region56
        $region55: #{tpu_custom_call.1} parent=51 // pred_region
          %387 = dma.done %s380, 256
        $region56: #{tpu_custom_call.1} parent=51 // pred_fallthru
          _
        %s388 = sand.u32 %s34, 1
        %s389 = scalar_lea.sflag [#allocation6], %s388
        %s390 = sand.u32 %s68, 1
        %s391 = smul.addr %s390, 16
        %s392 = scalar_lea.vmem [#allocation5], %s391
        // Predicated region
        $region57: #{tpu_custom_call.1} parent=51 // pred_check
          %p393 = pneg %p81
        $region58: #{tpu_custom_call.1} parent=51 // pred_check_branch
          %395 = sbr.rel (%p393) target = $region60
        $region59: #{tpu_custom_call.1} parent=51 // pred_region
          %396 = dma.done %s389, 256
        $region60: #{tpu_custom_call.1} parent=51 // pred_fallthru
          _
        // Predicated region
        $region61: #{tpu_custom_call.1} parent=51 // pred_check
          %p397 = pneg %p154
        $region62: #{tpu_custom_call.1} parent=51 // pred_check_branch
          %399 = sbr.rel (%p397) target = $region64
        $region63: #{tpu_custom_call.1} parent=51 // pred_region
          %400 = dma.done [#allocation6], 3072
        $region64: #{tpu_custom_call.1} parent=51 // pred_fallthru
          _
        // Predicated region
        $region65: #{tpu_custom_call.1} parent=51 // pred_check
          %p401 = pneg %p196
        $region66: #{tpu_custom_call.1} parent=51 // pred_check_branch
          %403 = sbr.rel (%p401) target = $region68
        $region67: #{tpu_custom_call.1} parent=51 // pred_region
          %404 = dma.done [#allocation9], 2048
        $region68: #{tpu_custom_call.1} parent=51 // pred_fallthru
          _
        %s405 = sand.u32 %s42, 1
        %s406 = scalar_lea.sflag [#allocation3], %s405
        %s407 = sand.u32 %s42, 1
        %s408 = smul.addr %s407, 16
        %s409 = scalar_lea.vmem [#allocation2], %s408
        %p410 = pneg %p55
        %p411 = pneg %p52
        %s412 = sand.u32 %s34, 1
        %s413 = scalar_lea.sflag [#allocation6], %s412
        %s414 = sand.u32 %s68, 1
        %s415 = smul.addr %s414, 16
        %s416 = scalar_lea.vmem [#allocation5], %s415
        %p417 = pneg %p81
        %p418 = pneg %p78
        %p419 = scmp.lt.s32.totalorder %s34, 1
        %s420 = scalar_select %p419, %s34, 1
        %s421 = smul.addr %s420, 8
        %s422 = scalar_lea.vmem %s2, %s421
        %p423 = pneg %p107
        %p424 = pneg %p104
        %p425 = scmp.lt.s32.totalorder %s34, 1
        %s426 = scalar_select %p425, %s34, 1
        %s427 = smul.addr %s426, 8
        %s428 = scalar_lea.vmem %s3, %s427
        %p429 = pneg %p133
        %p430 = pneg %p130
        %p431 = pneg %p154
        %p432 = pneg %p151
        %p433 = pneg %p175
        %p434 = pneg %p172
        %p435 = pneg %p196
        %p436 = pneg %p193
        %p437 = pneg %p217
        %p438 = pneg %p214
        %p439 = pneg %p243
        %p440 = pneg %p240
        %s441 = sand.u32 %s230, 1
        %s442 = scalar_lea.sflag [#allocation4], %s441
        %s443 = sand.u32 %s230, 1
        %s444 = smul.addr %s443, 16
        %s445 = scalar_lea.vmem [#allocation10], %s444
        %p446 = pneg %p269
        %p447 = pneg %p266
        %s448 = sand.u32 %s256, 1
        %s449 = scalar_lea.sflag [#allocation12], %s448
        %s450 = sand.u32 %s256, 1
        %s451 = smul.addr %s450, 16
        %s452 = scalar_lea.vmem [#allocation11], %s451
        %p453 = scmp.lt.s32.totalorder %s34, 1
        %s454 = scalar_select %p453, %s34, 1
        %s455 = smul.addr %s454, 8
        %s456 = scalar_lea.vmem %s2, %s455
        %p457 = scmp.lt.s32.totalorder %s34, 1
        %s458 = scalar_select %p457, %s34, 1
        %s459 = smul.addr %s458, 8
        %s460 = scalar_lea.vmem %s3, %s459
        %v462 = vld [vmem:[%s383] sm:$0xff]
        %v463 = vld [vmem:[%s383 + $0x8] sm:$0xff]
        %v464 = vmul.f32 %v462, 2.0
        %v465 = vmul.f32 %v463, 2.0
        %v466 = vsub.f32 %v464, 1.0
        %v467 = vsub.f32 %v465, 1.0
        %v468 = vld [vmem:[%s392] sm:$0xff]
        %v469 = vld [vmem:[%s392 + $0x8] sm:$0xff]
        %v470 = vld [vmem:[%s456] sm:$0xff]
        %472 = vset.pattern.permute.xlu0 0
        %473 = vperm.xlu0 %472, %v470
        %v474 = vpop.permute.xlu0 %473
        %v476 = vmul.f32 %v466, %v474
        %v477 = vmul.f32 %v467, %v474
        %478 = vset.pattern.permute.xlu0 1
        %479 = vperm.xlu0 %478, %v470
        %v480 = vpop.permute.xlu0 %479
        %v482 = vmul.f32 %v468, %v480
        %v483 = vmul.f32 %v469, %v480
        %v484 = vadd.f32 %v476, %v482
        %v485 = vadd.f32 %v477, %v483
        %486 = vst [vmem:[%s445] sm:$0xff] %v484
        %487 = vst [vmem:[%s445 + $0x8] sm:$0xff] %v485
        %v488 = vld [vmem:[%s460] sm:$0xff]
        %v489 = vpack.c.bf16 %v484, %v484
        %v490 = vpack.c.bf16 %v485, %v485
        %v491 = vpack.c.bf16 %v488, %v488
        %v492 = vld [vmem:[#allocation7] sm:$0xf]
        %v493 = vld [vmem:[#allocation7 + $0x4] sm:$0xf]
        %v494 = vld [vmem:[#allocation7 + $0x8] sm:$0xf]
        %v495 = vld [vmem:[#allocation7 + $0xc] sm:$0xf]
        %v496 = vld [vmem:[#allocation7 + $0x10] sm:$0xf]
        %v497 = vld [vmem:[#allocation7 + $0x14] sm:$0xf]
        %v498 = vld [vmem:[#allocation7 + $0x18] sm:$0xf]
        %v499 = vld [vmem:[#allocation7 + $0x1c] sm:$0xf]
        %v500 = vld [vmem:[#allocation7 + $0x20] sm:$0xf]
        %v501 = vld [vmem:[#allocation7 + $0x24] sm:$0xf]
        %v502 = vld [vmem:[#allocation7 + $0x28] sm:$0xf]
        %v503 = vld [vmem:[#allocation7 + $0x2c] sm:$0xf]
        %v504 = vld [vmem:[#allocation7 + $0x30] sm:$0xf]
        %v505 = vld [vmem:[#allocation7 + $0x34] sm:$0xf]
        %v506 = vld [vmem:[#allocation7 + $0x38] sm:$0xf]
        %v507 = vld [vmem:[#allocation7 + $0x3c] sm:$0xf]
        %v508 = vld [vmem:[#allocation7 + $0x40] sm:$0xf]
        %v509 = vld [vmem:[#allocation7 + $0x44] sm:$0xf]
        %v510 = vld [vmem:[#allocation7 + $0x48] sm:$0xf]
        %v511 = vld [vmem:[#allocation7 + $0x4c] sm:$0xf]
        %v512 = vld [vmem:[#allocation7 + $0x50] sm:$0xf]
        %v513 = vld [vmem:[#allocation7 + $0x54] sm:$0xf]
        %v514 = vld [vmem:[#allocation7 + $0x58] sm:$0xf]
        %v515 = vld [vmem:[#allocation7 + $0x5c] sm:$0xf]
        %v516 = vld [vmem:[#allocation7 + $0x60] sm:$0xf]
        %v517 = vld [vmem:[#allocation7 + $0x64] sm:$0xf]
        %v518 = vld [vmem:[#allocation7 + $0x68] sm:$0xf]
        %v519 = vld [vmem:[#allocation7 + $0x6c] sm:$0xf]
        %v520 = vld [vmem:[#allocation7 + $0x70] sm:$0xf]
        %v521 = vld [vmem:[#allocation7 + $0x74] sm:$0xf]
        %v522 = vld [vmem:[#allocation7 + $0x78] sm:$0xf]
        %v523 = vld [vmem:[#allocation7 + $0x7c] sm:$0xf]
        %v524 = vld [vmem:[#allocation7 + $0x80] sm:$0xf]
        %v525 = vld [vmem:[#allocation7 + $0x84] sm:$0xf]
        %v526 = vld [vmem:[#allocation7 + $0x88] sm:$0xf]
        %v527 = vld [vmem:[#allocation7 + $0x8c] sm:$0xf]
        %v528 = vld [vmem:[#allocation7 + $0x90] sm:$0xf]
        %v529 = vld [vmem:[#allocation7 + $0x94] sm:$0xf]
        %v530 = vld [vmem:[#allocation7 + $0x98] sm:$0xf]
        %v531 = vld [vmem:[#allocation7 + $0x9c] sm:$0xf]
        %v532 = vld [vmem:[#allocation7 + $0xa0] sm:$0xf]
        %v533 = vld [vmem:[#allocation7 + $0xa4] sm:$0xf]
        %v534 = vld [vmem:[#allocation7 + $0xa8] sm:$0xf]
        %v535 = vld [vmem:[#allocation7 + $0xac] sm:$0xf]
        %v536 = vld [vmem:[#allocation7 + $0xb0] sm:$0xf]
        %v537 = vld [vmem:[#allocation7 + $0xb4] sm:$0xf]
        %v538 = vld [vmem:[#allocation7 + $0xb8] sm:$0xf]
        %v539 = vld [vmem:[#allocation7 + $0xbc] sm:$0xf]
        %v540 = vld [vmem:[%s5] sm:$0x1]
        %v542 = vlaneseq
        %v543 = vshrl.u32 %v542, 7
        %v544 = vsub.s32 0, %v543
        %v545 = vrot.slane %v540, %v544
        %v595 = vunpack.c.l.b16 %v492
        %v596 = vunpack.c.l.b16 %v493
        %v597 = vunpack.c.l.b16 %v494
        %v598 = vunpack.c.l.b16 %v495
        %v599 = vunpack.c.l.b16 %v496
        %v600 = vunpack.c.l.b16 %v497
        %v601 = vunpack.c.l.b16 %v498
        %v602 = vunpack.c.l.b16 %v499
        %v603 = vunpack.c.l.b16 %v500
        %v604 = vunpack.c.l.b16 %v501
        %v605 = vunpack.c.l.b16 %v502
        %v606 = vunpack.c.l.b16 %v503
        %v607 = vunpack.c.l.b16 %v504
        %v608 = vunpack.c.l.b16 %v505
        %v609 = vunpack.c.l.b16 %v506
        %v610 = vunpack.c.l.b16 %v507
        %v611 = vunpack.c.l.b16 %v508
        %v612 = vunpack.c.l.b16 %v509
        %v613 = vunpack.c.l.b16 %v510
        %v614 = vunpack.c.l.b16 %v511
        %v615 = vunpack.c.l.b16 %v512
        %v616 = vunpack.c.l.b16 %v513
        %v617 = vunpack.c.l.b16 %v514
        %v618 = vunpack.c.l.b16 %v515
        %v619 = vunpack.c.l.b16 %v516
        %v620 = vunpack.c.l.b16 %v517
        %v621 = vunpack.c.l.b16 %v518
        %v622 = vunpack.c.l.b16 %v519
        %v623 = vunpack.c.l.b16 %v520
        %v624 = vunpack.c.l.b16 %v521
        %v625 = vunpack.c.l.b16 %v522
        %v626 = vunpack.c.l.b16 %v523
        %v627 = vunpack.c.l.b16 %v524
        %v628 = vunpack.c.l.b16 %v525
        %v629 = vunpack.c.l.b16 %v526
        %v630 = vunpack.c.l.b16 %v527
        %v631 = vunpack.c.l.b16 %v528
        %v632 = vunpack.c.l.b16 %v529
        %v633 = vunpack.c.l.b16 %v530
        %v634 = vunpack.c.l.b16 %v531
        %v635 = vunpack.c.l.b16 %v532
        %v636 = vunpack.c.l.b16 %v533
        %v637 = vunpack.c.l.b16 %v534
        %v638 = vunpack.c.l.b16 %v535
        %v639 = vunpack.c.l.b16 %v536
        %v640 = vunpack.c.l.b16 %v537
        %v641 = vunpack.c.l.b16 %v538
        %v642 = vunpack.c.l.b16 %v539
        %v643 = vpack.c.b16 %v596, %v595
        %v644 = vpack.c.b16 %v598, %v597
        %v645 = vpack.c.b16 %v600, %v599
        %v646 = vpack.c.b16 %v602, %v601
        %v647 = vpack.c.b16 %v604, %v603
        %v648 = vpack.c.b16 %v606, %v605
        %v649 = vpack.c.b16 %v608, %v607
        %v650 = vpack.c.b16 %v610, %v609
        %v651 = vpack.c.b16 %v612, %v611
        %v652 = vpack.c.b16 %v614, %v613
        %v653 = vpack.c.b16 %v616, %v615
        %v654 = vpack.c.b16 %v618, %v617
        %v655 = vpack.c.b16 %v620, %v619
        %v656 = vpack.c.b16 %v622, %v621
        %v657 = vpack.c.b16 %v624, %v623
        %v658 = vpack.c.b16 %v626, %v625
        %v659 = vpack.c.b16 %v628, %v627
        %v660 = vpack.c.b16 %v630, %v629
        %v661 = vpack.c.b16 %v632, %v631
        %v662 = vpack.c.b16 %v634, %v633
        %v663 = vpack.c.b16 %v636, %v635
        %v664 = vpack.c.b16 %v638, %v637
        %v665 = vpack.c.b16 %v640, %v639
        %v666 = vpack.c.b16 %v642, %v641
        %691 = vmatprep.subr.bf16.mxu0 0
        %692 = vmatpush1.bf16.msra.mxu0 %v650
        %693 = vmatprep.subr.bf16.mxu0 0
        %694 = vmatpush1.bf16.msra.mxu0 %v649
        %695 = vmatprep.subr.bf16.mxu0 0
        %696 = vmatpush1.bf16.msra.mxu0 %v648
        %697 = vmatprep.subr.bf16.mxu0 0
        %698 = vmatpush1.bf16.msra.mxu0 %v647
        %699 = vmatprep.subr.bf16.mxu0 0
        %700 = vmatpush1.bf16.msra.mxu0 %v646
        %701 = vmatprep.subr.bf16.mxu0 0
        %702 = vmatpush1.bf16.msra.mxu0 %v645
        %703 = vmatprep.subr.bf16.mxu0 0
        %704 = vmatpush1.bf16.msra.mxu0 %v644
        %705 = vmatprep.subr.bf16.mxu0 0
        %706 = vmatpush1.bf16.msra.mxu0 %v643
        %707 = vmatprep.subr.bf16.mxu0 0
        %708 = vmatpush2.bf16.msra.mxu0 %v658
        %709 = vmatprep.subr.bf16.mxu0 0
        %710 = vmatpush2.bf16.msra.mxu0 %v657
        %711 = vmatprep.subr.bf16.mxu0 0
        %712 = vmatpush2.bf16.msra.mxu0 %v656
        %713 = vmatprep.subr.bf16.mxu0 0
        %714 = vmatpush2.bf16.msra.mxu0 %v655
        %715 = vmatprep.subr.bf16.mxu0 0
        %716 = vmatpush2.bf16.msra.mxu0 %v654
        %717 = vmatprep.subr.bf16.mxu0 0
        %718 = vmatpush2.bf16.msra.mxu0 %v653
        %719 = vmatprep.subr.bf16.mxu0 0
        %720 = vmatpush2.bf16.msra.mxu0 %v652
        %721 = vmatprep.subr.bf16.mxu0 0
        %722 = vmatpush2.bf16.msra.mxu0 %v651
        %723 = vmatprep.mubr.bf16.mxu0 %v490
        %724 = vmatmul.mubr.bf16.gmra.mxu0 %v489
        %v725 = vpop.f32.mrf.mxu0
        %v726 = vadd.f32 %v545, %v725
        %v727 = vpop.f32.mrf.mxu0
        %v728 = vpop.f32.mrf.mxu0
        %v729 = vpop.f32.mrf.mxu0
        %730 = vdwg.mxu0
        %731 = vmatprep.subr.bf16.mxu0 0
        %732 = vmatpush1.bf16.msra.mxu0 %v666
        %733 = vmatprep.subr.bf16.mxu0 0
        %734 = vmatpush1.bf16.msra.mxu0 %v665
        %735 = vmatprep.subr.bf16.mxu0 0
        %736 = vmatpush1.bf16.msra.mxu0 %v664
        %737 = vmatprep.subr.bf16.mxu0 0
        %738 = vmatpush1.bf16.msra.mxu0 %v663
        %739 = vmatprep.subr.bf16.mxu0 0
        %740 = vmatpush1.bf16.msra.mxu0 %v662
        %741 = vmatprep.subr.bf16.mxu0 0
        %742 = vmatpush1.bf16.msra.mxu0 %v661
        %743 = vmatprep.subr.bf16.mxu0 0
        %744 = vmatpush1.bf16.msra.mxu0 %v660
        %745 = vmatprep.subr.bf16.mxu0 0
        %746 = vmatpush1.bf16.msra.mxu0 %v659
        %747 = vmatprep.subr.bf16.mxu0 0
        %748 = vmatpush2.bf16.msra.mxu0 0
        %749 = vmatprep.subr.bf16.mxu0 0
        %750 = vmatpush2.bf16.msra.mxu0 0
        %751 = vmatprep.subr.bf16.mxu0 0
        %752 = vmatpush2.bf16.msra.mxu0 0
        %753 = vmatprep.subr.bf16.mxu0 0
        %754 = vmatpush2.bf16.msra.mxu0 0
        %755 = vmatprep.subr.bf16.mxu0 0
        %756 = vmatpush2.bf16.msra.mxu0 0
        %757 = vmatprep.subr.bf16.mxu0 0
        %758 = vmatpush2.bf16.msra.mxu0 0
        %759 = vmatprep.subr.bf16.mxu0 0
        %760 = vmatpush2.bf16.msra.mxu0 0
        %761 = vmatprep.subr.bf16.mxu0 0
        %762 = vmatpush2.bf16.msra.mxu0 0
        %763 = vmatprep.mubr.bf16.mxu0 0
        %764 = vmatmul.mubr.bf16.gmra.mxu0 %v491
        %v765 = vpop.f32.mrf.mxu0
        %v766 = vadd.f32 %v726, %v765
        %v767 = vpop.f32.mrf.mxu0
        %v768 = vpop.f32.mrf.mxu0
        %v769 = vpop.f32.mrf.mxu0
        %770 = vdwg.mxu0
        %v771 = vmax.f32 %v766, 0.0
        %v772 = vpack.c.bf16 %v771, %v771
        %v773 = vld [vmem:[#allocation8] sm:$0xff]
        %v774 = vld [vmem:[#allocation8 + $0x8] sm:$0xff]
        %v775 = vld [vmem:[#allocation8 + $0x10] sm:$0xff]
        %v776 = vld [vmem:[#allocation8 + $0x18] sm:$0xff]
        %v777 = vld [vmem:[#allocation8 + $0x20] sm:$0xff]
        %v778 = vld [vmem:[#allocation8 + $0x28] sm:$0xff]
        %v779 = vld [vmem:[#allocation8 + $0x30] sm:$0xff]
        %v780 = vld [vmem:[#allocation8 + $0x38] sm:$0xff]
        %v781 = vld [vmem:[#allocation8 + $0x40] sm:$0xff]
        %v782 = vld [vmem:[#allocation8 + $0x48] sm:$0xff]
        %v783 = vld [vmem:[#allocation8 + $0x50] sm:$0xff]
        %v784 = vld [vmem:[#allocation8 + $0x58] sm:$0xff]
        %v785 = vld [vmem:[#allocation8 + $0x60] sm:$0xff]
        %v786 = vld [vmem:[#allocation8 + $0x68] sm:$0xff]
        %v787 = vld [vmem:[#allocation8 + $0x70] sm:$0xff]
        %v788 = vld [vmem:[#allocation8 + $0x78] sm:$0xff]
        %v789 = vld [vmem:[%s7] sm:$0x3]
        %v791 = vlaneseq
        %v792 = vshrl.u32 %v791, 7
        %v793 = vsub.s32 0, %v792
        %v794 = vrot.slane %v789, %v793
        %v795 = vlaneseq
        %v796 = vshrl.u32 %v795, 7
        %v797 = vsub.s32 1, %v796
        %v798 = vrot.slane %v789, %v797
        %v817 = vunpack.c.l.b16 %v773
        %v818 = vunpack.c.h.b16 %v773
        %v819 = vunpack.c.l.b16 %v774
        %v820 = vunpack.c.h.b16 %v774
        %v821 = vunpack.c.l.b16 %v775
        %v822 = vunpack.c.h.b16 %v775
        %v823 = vunpack.c.l.b16 %v776
        %v824 = vunpack.c.h.b16 %v776
        %v825 = vunpack.c.l.b16 %v777
        %v826 = vunpack.c.h.b16 %v777
        %v827 = vunpack.c.l.b16 %v778
        %v828 = vunpack.c.h.b16 %v778
        %v829 = vunpack.c.l.b16 %v779
        %v830 = vunpack.c.h.b16 %v779
        %v831 = vunpack.c.l.b16 %v780
        %v832 = vunpack.c.h.b16 %v780
        %v833 = vunpack.c.l.b16 %v781
        %v834 = vunpack.c.h.b16 %v781
        %v835 = vunpack.c.l.b16 %v782
        %v836 = vunpack.c.h.b16 %v782
        %v837 = vunpack.c.l.b16 %v783
        %v838 = vunpack.c.h.b16 %v783
        %v839 = vunpack.c.l.b16 %v784
        %v840 = vunpack.c.h.b16 %v784
        %v841 = vunpack.c.l.b16 %v785
        %v842 = vunpack.c.h.b16 %v785
        %v843 = vunpack.c.l.b16 %v786
        %v844 = vunpack.c.h.b16 %v786
        %v845 = vunpack.c.l.b16 %v787
        %v846 = vunpack.c.h.b16 %v787
        %v847 = vunpack.c.l.b16 %v788
        %v848 = vunpack.c.h.b16 %v788
        %v849 = vpack.c.b16 %v819, %v817
        %v850 = vpack.c.b16 %v820, %v818
        %v851 = vpack.c.b16 %v823, %v821
        %v852 = vpack.c.b16 %v824, %v822
        %v853 = vpack.c.b16 %v827, %v825
        %v854 = vpack.c.b16 %v828, %v826
        %v855 = vpack.c.b16 %v831, %v829
        %v856 = vpack.c.b16 %v832, %v830
        %v857 = vpack.c.b16 %v835, %v833
        %v858 = vpack.c.b16 %v836, %v834
        %v859 = vpack.c.b16 %v839, %v837
        %v860 = vpack.c.b16 %v840, %v838
        %v861 = vpack.c.b16 %v843, %v841
        %v862 = vpack.c.b16 %v844, %v842
        %v863 = vpack.c.b16 %v847, %v845
        %v864 = vpack.c.b16 %v848, %v846
        %881 = vmatprep.subr.bf16.mxu0 %v864
        %882 = vmatpush1.bf16.msra.mxu0 %v863
        %883 = vmatprep.subr.bf16.mxu0 %v862
        %884 = vmatpush1.bf16.msra.mxu0 %v861
        %885 = vmatprep.subr.bf16.mxu0 %v860
        %886 = vmatpush1.bf16.msra.mxu0 %v859
        %887 = vmatprep.subr.bf16.mxu0 %v858
        %888 = vmatpush1.bf16.msra.mxu0 %v857
        %889 = vmatprep.subr.bf16.mxu0 %v856
        %890 = vmatpush1.bf16.msra.mxu0 %v855
        %891 = vmatprep.subr.bf16.mxu0 %v854
        %892 = vmatpush1.bf16.msra.mxu0 %v853
        %893 = vmatprep.subr.bf16.mxu0 %v852
        %894 = vmatpush1.bf16.msra.mxu0 %v851
        %895 = vmatprep.subr.bf16.mxu0 %v850
        %896 = vmatpush1.bf16.msra.mxu0 %v849
        %897 = vmatprep.subr.bf16.mxu0 0
        %898 = vmatpush2.bf16.msra.mxu0 0
        %899 = vmatprep.subr.bf16.mxu0 0
        %900 = vmatpush2.bf16.msra.mxu0 0
        %901 = vmatprep.subr.bf16.mxu0 0
        %902 = vmatpush2.bf16.msra.mxu0 0
        %903 = vmatprep.subr.bf16.mxu0 0
        %904 = vmatpush2.bf16.msra.mxu0 0
        %905 = vmatprep.subr.bf16.mxu0 0
        %906 = vmatpush2.bf16.msra.mxu0 0
        %907 = vmatprep.subr.bf16.mxu0 0
        %908 = vmatpush2.bf16.msra.mxu0 0
        %909 = vmatprep.subr.bf16.mxu0 0
        %910 = vmatpush2.bf16.msra.mxu0 0
        %911 = vmatprep.subr.bf16.mxu0 0
        %912 = vmatpush2.bf16.msra.mxu0 0
        %913 = vmatprep.mubr.bf16.mxu0 0
        %914 = vmatmul.mubr.bf16.gmra.mxu0 %v772
        %v915 = vpop.f32.mrf.mxu0
        %v916 = vadd.f32 %v794, %v915
        %v917 = vpop.f32.mrf.mxu0
        %v918 = vadd.f32 %v798, %v917
        %v919 = vpop.f32.mrf.mxu0
        %v920 = vpop.f32.mrf.mxu0
        %921 = vdwg.mxu0
        %922 = vst [vmem:[%s452] sm:$0xff] %v916
        %923 = vst [vmem:[%s452 + $0x8] sm:$0xff] %v918
        %s924 = sand.u32 %s230, 1
        %s925 = scalar_lea.sflag [#allocation4], %s924
        %s926 = sand.u32 %s230, 1
        %s927 = smul.addr %s926, 16
        %s928 = scalar_lea.vmem [#allocation10], %s927
        %s929 = sand.u32 %s256, 1
        %s930 = scalar_lea.sflag [#allocation12], %s929
        %s931 = sand.u32 %s256, 1
        %s932 = smul.addr %s931, 16
        %s933 = scalar_lea.vmem [#allocation11], %s932
        // Predicated region
        $region69: #{tpu_custom_call.1} parent=51 // pred_check
          %p934 = pneg %p240
        $region70: #{tpu_custom_call.1} parent=51 // pred_check_branch
          %936 = sbr.rel (%p934) target = $region72
        $region71: #{tpu_custom_call.1} parent=51 // pred_region
          %s938 = ssub.s32 256, 256
          %939 = vsyncadd %s925, %s938
          %s940 = smul.addr %s34, 2
          %s941 = smul.addr %s940, 128
          %s942 = scalar_lea.hbm %s8, %s941
          %s944 = sshll.u32 %s928, 4
          %s945 = int_to_ptr.vmem [resolvable:$true] %s944
          %947 = dma.vmem_to_hbm [thread:$0]  %s945, 256, %s942, %s925
        $region72: #{tpu_custom_call.1} parent=51 // pred_fallthru
          _
        // Predicated region
        $region73: #{tpu_custom_call.1} parent=51 // pred_check
          %p948 = pneg %p266
        $region74: #{tpu_custom_call.1} parent=51 // pred_check_branch
          %950 = sbr.rel (%p948) target = $region76
        $region75: #{tpu_custom_call.1} parent=51 // pred_region
          %s952 = ssub.s32 256, 256
          %953 = vsyncadd %s930, %s952
          %s954 = smul.addr %s34, 2
          %s955 = smul.addr %s954, 128
          %s956 = scalar_lea.hbm %s9, %s955
          %s958 = sshll.u32 %s933, 4
          %s959 = int_to_ptr.vmem [resolvable:$true] %s958
          %961 = dma.vmem_to_hbm [thread:$0]  %s959, 256, %s956, %s930
        $region76: #{tpu_custom_call.1} parent=51 // pred_fallthru
          _
      $region52: #{tpu_custom_call.1} parent=5 // pred_fallthru
        _
      %p962 = scmp.le.s32.totalorder 2, %s29
      // Predicated region
      $region77: #{tpu_custom_call.1} parent=5 // pred_check
        %p963 = pneg %p962
      $region78: #{tpu_custom_call.1} parent=5 // pred_check_branch
        %965 = sbr.rel (%p963) target = $region80
      $region79: #{tpu_custom_call.1} parent=5 // pred_region
        %s966 = ssub.s32 %s29, 2
        // Predicated region
        $region81: #{tpu_custom_call.1} parent=79 // pred_check
          %p967 = pneg %p246
        $region82: #{tpu_custom_call.1} parent=79 // pred_check_branch
          %969 = sbr.rel (%p967) target = $region84
        $region83: #{tpu_custom_call.1} parent=79 // pred_region
          %s970 = sand.u32 %s231, 1
          %s971 = scalar_lea.sflag [#allocation4], %s970
          %s972 = sand.u32 %s231, 1
          %s973 = smul.addr %s972, 16
          %s974 = scalar_lea.vmem [#allocation10], %s973
          %975 = dma.done %s971, 256
        $region84: #{tpu_custom_call.1} parent=79 // pred_fallthru
          _
        // Predicated region
        $region85: #{tpu_custom_call.1} parent=79 // pred_check
          %p976 = pneg %p272
        $region86: #{tpu_custom_call.1} parent=79 // pred_check_branch
          %978 = sbr.rel (%p976) target = $region88
        $region87: #{tpu_custom_call.1} parent=79 // pred_region
          %s979 = sand.u32 %s257, 1
          %s980 = scalar_lea.sflag [#allocation12], %s979
          %s981 = sand.u32 %s257, 1
          %s982 = smul.addr %s981, 16
          %s983 = scalar_lea.vmem [#allocation11], %s982
          %984 = dma.done %s980, 256
        $region88: #{tpu_custom_call.1} parent=79 // pred_fallthru
          _
      $region80: #{tpu_custom_call.1} parent=5 // pred_fallthru
        _
    $region6: #{tpu_custom_call.1} parent=1 // loop_footer
      %s33 = sadd.s32 1, %s29
    $region7: #{tpu_custom_call.1} parent=1 // loop_footer_branch
      %28 = sbr.rel target = $region3
    $region8: #{tpu_custom_call.1} parent=1 // loop_exit
      _
    %985 = vsyncpa [#allocation3], 1
    %s986 = scalar_lea.sflag [#allocation3], 1
    %987 = vsyncpa %s986, 1
    %988 = vsyncpa [#allocation6], 1
    %s989 = scalar_lea.sflag [#allocation6], 1
    %990 = vsyncpa %s989, 1
    %991 = vsyncpa [#allocation9], 1
    %992 = vsyncpa [#allocation4], 1
    %s993 = scalar_lea.sflag [#allocation4], 1
    %994 = vsyncpa %s993, 1
    %995 = vsyncpa [#allocation12], 1
    %s996 = scalar_lea.sflag [#allocation12], 1
    %997 = vsyncpa %s996, 1

</llo_original>
